<compile_context>
chip_gen: v5e
topology: v5e:2x2
jax: 0.10.0
libtpu: 0.0.40
codegen_flags: <defaults>
</compile_context>

<pallas_src>
import jax
import jax.numpy as jnp
from jax.experimental import pallas as pl
from jax.experimental.pallas import tpu as pltpu

INPUT_FEATURES = 5
HIDDEN_FEATURES = 2
OUT_FEATURES = 5

_LANES = 128
_SUBLANES = 8
_MIN_TILE = _LANES * _SUBLANES          # 1024 batch elems = one full f32 vreg
_MAX_TILE = 512 * 1024                  # keeps double-buffered VMEM <= ~44 MiB (v7x safe)


def _round_up(n, m):
    return ((n + m - 1) // m) * m


def _toy_mlp_kernel(w1_ref, b1_ref, w2_ref, b2_ref, x_ref, o_ref):
    # x_ref: (IN, 8, tb8) f32 in VMEM -- batch fills sublanes AND lanes (dense vregs).
    # o_ref: (OUT, 8, tb8).
    # w*/b* refs: tiny parameter tensors resident in SMEM (scalar reads).

    # Hoist every SMEM scalar out of the FMA chains (read once, up front).
    w1 = [[w1_ref[k, j] for j in range(HIDDEN_FEATURES)] for k in range(INPUT_FEATURES)]
    b1 = [b1_ref[j] for j in range(HIDDEN_FEATURES)]
    w2 = [[w2_ref[k, j] for j in range(OUT_FEATURES)] for k in range(HIDDEN_FEATURES)]
    b2 = [b2_ref[j] for j in range(OUT_FEATURES)]

    # Per-feature dense (8, tb8) slabs.
    xs = [x_ref[k] for k in range(INPUT_FEATURES)]

    # Hidden layer: h_j = relu(b1_j + sum_k w1[k, j] * x_k)  (unrolled VPU FMAs;
    # K=5 is far too small for a padded MXU pass).
    h = []
    for j in range(HIDDEN_FEATURES):
        acc = xs[0] * w1[0][j]
        for k in range(1, INPUT_FEATURES):
            acc = acc + xs[k] * w1[k][j]
        h.append(jnp.maximum(acc + b1[j], 0.0))        # (8, tb8)

    # Output layer: o_j = b2_j + sum_k w2[k, j] * h_k  -- dense (8, tb8) stores.
    for j in range(OUT_FEATURES):
        acc = h[0] * w2[0][j]
        for k in range(1, HIDDEN_FEATURES):
            acc = acc + h[k] * w2[k][j]
        o_ref[j] = acc + b2[j]


def toy_model_forward_t(x_t, w1, b1, w2, b2, *, block_b=128 * 1024):
    """Features-first forward: x_t (INPUT_FEATURES, B) -> (OUT_FEATURES, B).

    Zero wrapper-side copies when B is already a multiple of 1024 (the 3-D
    reshape is a free row-major view).  Use this entry point if the surrounding
    model keeps a (features, batch) layout.
    """
    in_f, B = x_t.shape
    assert in_f == INPUT_FEATURES

    # Tile selection: large (>=1024, <=512K) batch tiles, bounded padding waste.
    block_b = _round_up(max(_MIN_TILE, min(block_b, _MAX_TILE)), _MIN_TILE)
    b_min = _round_up(B, _MIN_TILE)                    # pad only to a vreg multiple
    num_tiles = pl.cdiv(b_min, block_b)
    if num_tiles == 1 and b_min >= 128 * 1024:
        num_tiles = 2                                  # keep both v7x TCs busy
    tb = _round_up(pl.cdiv(b_min, num_tiles), _MIN_TILE)
    b_pad = tb * num_tiles
    tb8 = tb // _SUBLANES

    if b_pad != B:
        x_t = jnp.pad(x_t, ((0, 0), (0, b_pad - B)))
    # Free row-major reshape: batch fills sublanes and lanes of every vreg.
    x3 = x_t.reshape(INPUT_FEATURES, _SUBLANES, b_pad // _SUBLANES)

    smem = pl.BlockSpec(memory_space=pltpu.MemorySpace.SMEM)

    # Double-buffered in+out blocks, plus headroom; capped for v7x's 64 MiB VMEM.
    block_bytes = 4 * tb * (INPUT_FEATURES + OUT_FEATURES)
    vmem_limit = min(max(2 * block_bytes + (4 << 20), 32 << 20), 48 << 20)

    out3 = pl.pallas_call(
        _toy_mlp_kernel,
        out_shape=jax.ShapeDtypeStruct(
            (OUT_FEATURES, _SUBLANES, b_pad // _SUBLANES), jnp.float32),
        grid_spec=pl.GridSpec(
            grid=(num_tiles,),
            in_specs=[
                smem,                                            # w1 (5, 2)
                smem,                                            # b1 (2,)
                smem,                                            # w2 (2, 5)
                smem,                                            # b2 (5,)
                pl.BlockSpec((INPUT_FEATURES, _SUBLANES, tb8), lambda i: (0, 0, i)),
            ],
            out_specs=pl.BlockSpec((OUT_FEATURES, _SUBLANES, tb8), lambda i: (0, 0, i)),
        ),
        compiler_params=pltpu.CompilerParams(
            dimension_semantics=("parallel",),   # batch tiles shard across TCs (v7x)
            vmem_limit_bytes=vmem_limit,
        ),
    )(w1, b1, w2, b2, x3)

    out_t = out3.reshape(OUT_FEATURES, b_pad)
    return out_t[:, :B] if b_pad != B else out_t


def toy_model_forward(x, w1, b1, w2, b2, *, block_b=128 * 1024):
    """PyTorch-layout wrapper: x (B, INPUT_FEATURES) -> (B, OUT_FEATURES).

    w1: (INPUT_FEATURES, HIDDEN_FEATURES), b1: (HIDDEN_FEATURES,)
    w2: (HIDDEN_FEATURES, OUT_FEATURES),  b2: (OUT_FEATURES,)

    The transpose to/from (features, batch) is the one remaining wrapper-side
    HBM round trip; prefer toy_model_forward_t when the caller can keep a
    features-first layout end-to-end.
    """
    out_t = toy_model_forward_t(x.T, w1, b1, w2, b2, block_b=block_b)
    return out_t.T


def init_params(key):
    """Deterministic init mimicking nn.Linear's uniform(-1/sqrt(fan_in), 1/sqrt(fan_in))."""
    k1, k2, k3, k4 = jax.random.split(key, 4)
    bound1 = 1.0 / (INPUT_FEATURES ** 0.5)
    bound2 = 1.0 / (HIDDEN_FEATURES ** 0.5)
    # Stored as (in, out): transpose of PyTorch's (out, in).
    w1 = jax.random.uniform(k1, (INPUT_FEATURES, HIDDEN_FEATURES), jnp.float32,
                            -bound1, bound1)
    b1 = jax.random.uniform(k2, (HIDDEN_FEATURES,), jnp.float32, -bound1, bound1)
    w2 = jax.random.uniform(k3, (HIDDEN_FEATURES, OUT_FEATURES), jnp.float32,
                            -bound2, bound2)
    b2 = jax.random.uniform(k4, (OUT_FEATURES,), jnp.float32, -bound2, bound2)
    return w1, b1, w2, b2


def _reference(x, w1, b1, w2, b2):
    return jnp.maximum(x @ w1 + b1, 0.0) @ w2 + b2


if __name__ == "__main__":
    key = jax.random.PRNGKey(0)
    k_x, k_p, k_x2 = jax.random.split(key, 3)
    w1, b1, w2, b2 = init_params(k_p)

    fwd = jax.jit(toy_model_forward, static_argnames=("block_b",))

    # Small batch (single padded tile).
    B = 8
    x = jax.random.normal(k_x, (B, INPUT_FEATURES), jnp.float32)
    out = jax.block_until_ready(fwd(x, w1, b1, w2, b2))
    ref = _reference(x, w1, b1, w2, b2)
    assert out.shape == (B, OUT_FEATURES)
    assert jnp.allclose(out, ref, atol=1e-5, rtol=1e-5)

    # Larger, non-multiple batch with a small tile to exercise the multi-tile
    # pipelined grid and the bounded-padding tail handling.
    B2 = 3000
    x2 = jax.random.normal(k_x2, (B2, INPUT_FEATURES), jnp.float32)
    out2 = jax.block_until_ready(fwd(x2, w1, b1, w2, b2, block_b=1024))
    ref2 = _reference(x2, w1, b1, w2, b2)
    assert out2.shape == (B2, OUT_FEATURES)
    assert jnp.allclose(out2, ref2, atol=1e-5, rtol=1e-5)

    # Features-first entry point (no wrapper transpose at all).
    out_t = jax.block_until_ready(toy_model_forward_t(x2.T, w1, b1, w2, b2))
    assert out_t.shape == (OUT_FEATURES, B2)
    assert jnp.allclose(out_t.T, ref2, atol=1e-5, rtol=1e-5)

    print("KERNEL_OK")
</pallas_src>

<mosaic_0001>
module attributes {stable_mosaic.version = 11 : i64} {
  func.func @_toy_mlp_kernel(%arg0: i32, %arg1: memref<5x2xf32, #tpu.memory_space<smem>>, %arg2: memref<2xf32, #tpu.memory_space<smem>>, %arg3: memref<2x5xf32, #tpu.memory_space<smem>>, %arg4: memref<5xf32, #tpu.memory_space<smem>>, %arg5: memref<5x8x128xf32, #tpu.memory_space<vmem>>, %arg6: memref<5x8x128xf32, #tpu.memory_space<vmem>>) attributes {dimension_semantics = [#tpu.dimension_semantics<parallel>], iteration_bounds = array<i64: 1>, scalar_prefetch = 0 : i64, scratch_operands = 0 : i64, tpu.core_type = #tpu.core_type<tc>, window_params = [{transform_indices = @transform_0, window_bounds = array<i64: 5, 2>}, {transform_indices = @transform_1, window_bounds = array<i64: 2>}, {transform_indices = @transform_2, window_bounds = array<i64: 2, 5>}, {transform_indices = @transform_3, window_bounds = array<i64: 5>}, {transform_indices = @transform_4, window_bounds = array<i64: 5, 8, 128>}, {transform_indices = @transform_5, window_bounds = array<i64: 5, 8, 128>}]} {
    %c0 = arith.constant 0 : index
    %c0_0 = arith.constant 0 : index
    %0 = memref.load %arg1[%c0, %c0_0] : memref<5x2xf32, #tpu.memory_space<smem>>
    %c0_1 = arith.constant 0 : index
    %c1 = arith.constant 1 : index
    %1 = memref.load %arg1[%c0_1, %c1] : memref<5x2xf32, #tpu.memory_space<smem>>
    %c1_2 = arith.constant 1 : index
    %c0_3 = arith.constant 0 : index
    %2 = memref.load %arg1[%c1_2, %c0_3] : memref<5x2xf32, #tpu.memory_space<smem>>
    %c1_4 = arith.constant 1 : index
    %c1_5 = arith.constant 1 : index
    %3 = memref.load %arg1[%c1_4, %c1_5] : memref<5x2xf32, #tpu.memory_space<smem>>
    %c2 = arith.constant 2 : index
    %c0_6 = arith.constant 0 : index
    %4 = memref.load %arg1[%c2, %c0_6] : memref<5x2xf32, #tpu.memory_space<smem>>
    %c2_7 = arith.constant 2 : index
    %c1_8 = arith.constant 1 : index
    %5 = memref.load %arg1[%c2_7, %c1_8] : memref<5x2xf32, #tpu.memory_space<smem>>
    %c3 = arith.constant 3 : index
    %c0_9 = arith.constant 0 : index
    %6 = memref.load %arg1[%c3, %c0_9] : memref<5x2xf32, #tpu.memory_space<smem>>
    %c3_10 = arith.constant 3 : index
    %c1_11 = arith.constant 1 : index
    %7 = memref.load %arg1[%c3_10, %c1_11] : memref<5x2xf32, #tpu.memory_space<smem>>
    %c4 = arith.constant 4 : index
    %c0_12 = arith.constant 0 : index
    %8 = memref.load %arg1[%c4, %c0_12] : memref<5x2xf32, #tpu.memory_space<smem>>
    %c4_13 = arith.constant 4 : index
    %c1_14 = arith.constant 1 : index
    %9 = memref.load %arg1[%c4_13, %c1_14] : memref<5x2xf32, #tpu.memory_space<smem>>
    %c0_15 = arith.constant 0 : index
    %10 = memref.load %arg2[%c0_15] : memref<2xf32, #tpu.memory_space<smem>>
    %c1_16 = arith.constant 1 : index
    %11 = memref.load %arg2[%c1_16] : memref<2xf32, #tpu.memory_space<smem>>
    %c0_17 = arith.constant 0 : index
    %c0_18 = arith.constant 0 : index
    %12 = memref.load %arg3[%c0_17, %c0_18] : memref<2x5xf32, #tpu.memory_space<smem>>
    %c0_19 = arith.constant 0 : index
    %c1_20 = arith.constant 1 : index
    %13 = memref.load %arg3[%c0_19, %c1_20] : memref<2x5xf32, #tpu.memory_space<smem>>
    %c0_21 = arith.constant 0 : index
    %c2_22 = arith.constant 2 : index
    %14 = memref.load %arg3[%c0_21, %c2_22] : memref<2x5xf32, #tpu.memory_space<smem>>
    %c0_23 = arith.constant 0 : index
    %c3_24 = arith.constant 3 : index
    %15 = memref.load %arg3[%c0_23, %c3_24] : memref<2x5xf32, #tpu.memory_space<smem>>
    %c0_25 = arith.constant 0 : index
    %c4_26 = arith.constant 4 : index
    %16 = memref.load %arg3[%c0_25, %c4_26] : memref<2x5xf32, #tpu.memory_space<smem>>
    %c1_27 = arith.constant 1 : index
    %c0_28 = arith.constant 0 : index
    %17 = memref.load %arg3[%c1_27, %c0_28] : memref<2x5xf32, #tpu.memory_space<smem>>
    %c1_29 = arith.constant 1 : index
    %c1_30 = arith.constant 1 : index
    %18 = memref.load %arg3[%c1_29, %c1_30] : memref<2x5xf32, #tpu.memory_space<smem>>
    %c1_31 = arith.constant 1 : index
    %c2_32 = arith.constant 2 : index
    %19 = memref.load %arg3[%c1_31, %c2_32] : memref<2x5xf32, #tpu.memory_space<smem>>
    %c1_33 = arith.constant 1 : index
    %c3_34 = arith.constant 3 : index
    %20 = memref.load %arg3[%c1_33, %c3_34] : memref<2x5xf32, #tpu.memory_space<smem>>
    %c1_35 = arith.constant 1 : index
    %c4_36 = arith.constant 4 : index
    %21 = memref.load %arg3[%c1_35, %c4_36] : memref<2x5xf32, #tpu.memory_space<smem>>
    %c0_37 = arith.constant 0 : index
    %22 = memref.load %arg4[%c0_37] : memref<5xf32, #tpu.memory_space<smem>>
    %c1_38 = arith.constant 1 : index
    %23 = memref.load %arg4[%c1_38] : memref<5xf32, #tpu.memory_space<smem>>
    %c2_39 = arith.constant 2 : index
    %24 = memref.load %arg4[%c2_39] : memref<5xf32, #tpu.memory_space<smem>>
    %c3_40 = arith.constant 3 : index
    %25 = memref.load %arg4[%c3_40] : memref<5xf32, #tpu.memory_space<smem>>
    %c4_41 = arith.constant 4 : index
    %26 = memref.load %arg4[%c4_41] : memref<5xf32, #tpu.memory_space<smem>>
    %c0_42 = arith.constant 0 : index
    %c0_43 = arith.constant 0 : index
    %c0_44 = arith.constant 0 : index
    %27 = vector.load %arg5[%c0_42, %c0_43, %c0_44] : memref<5x8x128xf32, #tpu.memory_space<vmem>>, vector<1x8x128xf32>
    %28 = vector.shape_cast %27 : vector<1x8x128xf32> to vector<8x128xf32>
    %c1_45 = arith.constant 1 : index
    %c0_46 = arith.constant 0 : index
    %c0_47 = arith.constant 0 : index
    %29 = vector.load %arg5[%c1_45, %c0_46, %c0_47] : memref<5x8x128xf32, #tpu.memory_space<vmem>>, vector<1x8x128xf32>
    %30 = vector.shape_cast %29 : vector<1x8x128xf32> to vector<8x128xf32>
    %c2_48 = arith.constant 2 : index
    %c0_49 = arith.constant 0 : index
    %c0_50 = arith.constant 0 : index
    %31 = vector.load %arg5[%c2_48, %c0_49, %c0_50] : memref<5x8x128xf32, #tpu.memory_space<vmem>>, vector<1x8x128xf32>
    %32 = vector.shape_cast %31 : vector<1x8x128xf32> to vector<8x128xf32>
    %c3_51 = arith.constant 3 : index
    %c0_52 = arith.constant 0 : index
    %c0_53 = arith.constant 0 : index
    %33 = vector.load %arg5[%c3_51, %c0_52, %c0_53] : memref<5x8x128xf32, #tpu.memory_space<vmem>>, vector<1x8x128xf32>
    %34 = vector.shape_cast %33 : vector<1x8x128xf32> to vector<8x128xf32>
    %c4_54 = arith.constant 4 : index
    %c0_55 = arith.constant 0 : index
    %c0_56 = arith.constant 0 : index
    %35 = vector.load %arg5[%c4_54, %c0_55, %c0_56] : memref<5x8x128xf32, #tpu.memory_space<vmem>>, vector<1x8x128xf32>
    %36 = vector.shape_cast %35 : vector<1x8x128xf32> to vector<8x128xf32>
    %37 = vector.broadcast %0 : f32 to vector<8x128xf32>
    %38 = arith.mulf %28, %37 : vector<8x128xf32>
    %39 = vector.broadcast %2 : f32 to vector<8x128xf32>
    %40 = arith.mulf %30, %39 : vector<8x128xf32>
    %41 = arith.addf %38, %40 : vector<8x128xf32>
    %42 = vector.broadcast %4 : f32 to vector<8x128xf32>
    %43 = arith.mulf %32, %42 : vector<8x128xf32>
    %44 = arith.addf %41, %43 : vector<8x128xf32>
    %45 = vector.broadcast %6 : f32 to vector<8x128xf32>
    %46 = arith.mulf %34, %45 : vector<8x128xf32>
    %47 = arith.addf %44, %46 : vector<8x128xf32>
    %48 = vector.broadcast %8 : f32 to vector<8x128xf32>
    %49 = arith.mulf %36, %48 : vector<8x128xf32>
    %50 = arith.addf %47, %49 : vector<8x128xf32>
    %51 = vector.broadcast %10 : f32 to vector<8x128xf32>
    %52 = arith.addf %50, %51 : vector<8x128xf32>
    %cst = arith.constant 0.000000e+00 : f32
    %53 = vector.broadcast %cst : f32 to vector<8x128xf32>
    %54 = arith.maximumf %52, %53 : vector<8x128xf32>
    %55 = vector.broadcast %1 : f32 to vector<8x128xf32>
    %56 = arith.mulf %28, %55 : vector<8x128xf32>
    %57 = vector.broadcast %3 : f32 to vector<8x128xf32>
    %58 = arith.mulf %30, %57 : vector<8x128xf32>
    %59 = arith.addf %56, %58 : vector<8x128xf32>
    %60 = vector.broadcast %5 : f32 to vector<8x128xf32>
    %61 = arith.mulf %32, %60 : vector<8x128xf32>
    %62 = arith.addf %59, %61 : vector<8x128xf32>
    %63 = vector.broadcast %7 : f32 to vector<8x128xf32>
    %64 = arith.mulf %34, %63 : vector<8x128xf32>
    %65 = arith.addf %62, %64 : vector<8x128xf32>
    %66 = vector.broadcast %9 : f32 to vector<8x128xf32>
    %67 = arith.mulf %36, %66 : vector<8x128xf32>
    %68 = arith.addf %65, %67 : vector<8x128xf32>
    %69 = vector.broadcast %11 : f32 to vector<8x128xf32>
    %70 = arith.addf %68, %69 : vector<8x128xf32>
    %cst_57 = arith.constant 0.000000e+00 : f32
    %71 = vector.broadcast %cst_57 : f32 to vector<8x128xf32>
    %72 = arith.maximumf %70, %71 : vector<8x128xf32>
    %73 = vector.broadcast %12 : f32 to vector<8x128xf32>
    %74 = arith.mulf %54, %73 : vector<8x128xf32>
    %75 = vector.broadcast %17 : f32 to vector<8x128xf32>
    %76 = arith.mulf %72, %75 : vector<8x128xf32>
    %77 = arith.addf %74, %76 : vector<8x128xf32>
    %78 = vector.broadcast %22 : f32 to vector<8x128xf32>
    %79 = arith.addf %77, %78 : vector<8x128xf32>
    %c0_58 = arith.constant 0 : index
    %c0_59 = arith.constant 0 : index
    %c0_60 = arith.constant 0 : index
    %80 = vector.load %arg6[%c0_58, %c0_59, %c0_60] : memref<5x8x128xf32, #tpu.memory_space<vmem>>, vector<1x8x128xf32>
    %81 = vector.shape_cast %80 : vector<1x8x128xf32> to vector<8x128xf32>
    %82 = vector.shape_cast %79 : vector<8x128xf32> to vector<1x8x128xf32>
    tpu.vector_store %arg6[%c0_58, %c0_59, %c0_60], %82 {strides = array<i32>} : memref<5x8x128xf32, #tpu.memory_space<vmem>>, vector<1x8x128xf32>,
    %83 = vector.broadcast %13 : f32 to vector<8x128xf32>
    %84 = arith.mulf %54, %83 : vector<8x128xf32>
    %85 = vector.broadcast %18 : f32 to vector<8x128xf32>
    %86 = arith.mulf %72, %85 : vector<8x128xf32>
    %87 = arith.addf %84, %86 : vector<8x128xf32>
    %88 = vector.broadcast %23 : f32 to vector<8x128xf32>
    %89 = arith.addf %87, %88 : vector<8x128xf32>
    %c1_61 = arith.constant 1 : index
    %c0_62 = arith.constant 0 : index
    %c0_63 = arith.constant 0 : index
    %90 = vector.load %arg6[%c1_61, %c0_62, %c0_63] : memref<5x8x128xf32, #tpu.memory_space<vmem>>, vector<1x8x128xf32>
    %91 = vector.shape_cast %90 : vector<1x8x128xf32> to vector<8x128xf32>
    %92 = vector.shape_cast %89 : vector<8x128xf32> to vector<1x8x128xf32>
    tpu.vector_store %arg6[%c1_61, %c0_62, %c0_63], %92 {strides = array<i32>} : memref<5x8x128xf32, #tpu.memory_space<vmem>>, vector<1x8x128xf32>,
    %93 = vector.broadcast %14 : f32 to vector<8x128xf32>
    %94 = arith.mulf %54, %93 : vector<8x128xf32>
    %95 = vector.broadcast %19 : f32 to vector<8x128xf32>
    %96 = arith.mulf %72, %95 : vector<8x128xf32>
    %97 = arith.addf %94, %96 : vector<8x128xf32>
    %98 = vector.broadcast %24 : f32 to vector<8x128xf32>
    %99 = arith.addf %97, %98 : vector<8x128xf32>
    %c2_64 = arith.constant 2 : index
    %c0_65 = arith.constant 0 : index
    %c0_66 = arith.constant 0 : index
    %100 = vector.load %arg6[%c2_64, %c0_65, %c0_66] : memref<5x8x128xf32, #tpu.memory_space<vmem>>, vector<1x8x128xf32>
    %101 = vector.shape_cast %100 : vector<1x8x128xf32> to vector<8x128xf32>
    %102 = vector.shape_cast %99 : vector<8x128xf32> to vector<1x8x128xf32>
    tpu.vector_store %arg6[%c2_64, %c0_65, %c0_66], %102 {strides = array<i32>} : memref<5x8x128xf32, #tpu.memory_space<vmem>>, vector<1x8x128xf32>,
    %103 = vector.broadcast %15 : f32 to vector<8x128xf32>
    %104 = arith.mulf %54, %103 : vector<8x128xf32>
    %105 = vector.broadcast %20 : f32 to vector<8x128xf32>
    %106 = arith.mulf %72, %105 : vector<8x128xf32>
    %107 = arith.addf %104, %106 : vector<8x128xf32>
    %108 = vector.broadcast %25 : f32 to vector<8x128xf32>
    %109 = arith.addf %107, %108 : vector<8x128xf32>
    %c3_67 = arith.constant 3 : index
    %c0_68 = arith.constant 0 : index
    %c0_69 = arith.constant 0 : index
    %110 = vector.load %arg6[%c3_67, %c0_68, %c0_69] : memref<5x8x128xf32, #tpu.memory_space<vmem>>, vector<1x8x128xf32>
    %111 = vector.shape_cast %110 : vector<1x8x128xf32> to vector<8x128xf32>
    %112 = vector.shape_cast %109 : vector<8x128xf32> to vector<1x8x128xf32>
    tpu.vector_store %arg6[%c3_67, %c0_68, %c0_69], %112 {strides = array<i32>} : memref<5x8x128xf32, #tpu.memory_space<vmem>>, vector<1x8x128xf32>,
    %113 = vector.broadcast %16 : f32 to vector<8x128xf32>
    %114 = arith.mulf %54, %113 : vector<8x128xf32>
    %115 = vector.broadcast %21 : f32 to vector<8x128xf32>
    %116 = arith.mulf %72, %115 : vector<8x128xf32>
    %117 = arith.addf %114, %116 : vector<8x128xf32>
    %118 = vector.broadcast %26 : f32 to vector<8x128xf32>
    %119 = arith.addf %117, %118 : vector<8x128xf32>
    %c4_70 = arith.constant 4 : index
    %c0_71 = arith.constant 0 : index
    %c0_72 = arith.constant 0 : index
    %120 = vector.load %arg6[%c4_70, %c0_71, %c0_72] : memref<5x8x128xf32, #tpu.memory_space<vmem>>, vector<1x8x128xf32>
    %121 = vector.shape_cast %120 : vector<1x8x128xf32> to vector<8x128xf32>
    %122 = vector.shape_cast %119 : vector<8x128xf32> to vector<1x8x128xf32>
    tpu.vector_store %arg6[%c4_70, %c0_71, %c0_72], %122 {strides = array<i32>} : memref<5x8x128xf32, #tpu.memory_space<vmem>>, vector<1x8x128xf32>,
    return
  }
  func.func @transform_0(%arg0: i32) -> (i32, i32) {
    %c0_i32 = arith.constant 0 : i32
    %c0_i32_0 = arith.constant 0 : i32
    %c0_i32_1 = arith.constant 0 : i32
    return %c0_i32, %c0_i32_0 : i32, i32
  }
  func.func @transform_1(%arg0: i32) -> i32 {
    %c0_i32 = arith.constant 0 : i32
    %c0_i32_0 = arith.constant 0 : i32
    return %c0_i32 : i32
  }
  func.func @transform_2(%arg0: i32) -> (i32, i32) {
    %c0_i32 = arith.constant 0 : i32
    %c0_i32_0 = arith.constant 0 : i32
    %c0_i32_1 = arith.constant 0 : i32
    return %c0_i32, %c0_i32_0 : i32, i32
  }
  func.func @transform_3(%arg0: i32) -> i32 {
    %c0_i32 = arith.constant 0 : i32
    %c0_i32_0 = arith.constant 0 : i32
    return %c0_i32 : i32
  }
  func.func @transform_4(%arg0: i32) -> (i32, i32, i32) {
    %c0_i32 = arith.constant 0 : i32
    %c0_i32_0 = arith.constant 0 : i32
    %c0_i32_1 = arith.constant 0 : i32
    return %c0_i32, %c0_i32_0, %arg0 : i32, i32, i32
  }
  func.func @transform_5(%arg0: i32) -> (i32, i32, i32) {
    %c0_i32 = arith.constant 0 : i32
    %c0_i32_0 = arith.constant 0 : i32
    %c0_i32_1 = arith.constant 0 : i32
    return %c0_i32, %c0_i32_0, %arg0 : i32, i32, i32
  }
}

</mosaic_0001>

<llo_original>
// kernel: toy_model_forward.1
$region0: #{toy_model_forward.1}
  #allocation0 [shape = 'u32[]', space=smem, size = 0x4, offset = 0x4, fixed_abs, tag = 'smem constant byte address 0x4 - core index']
  #allocation1 [shape = 'u32[72,128]{1,0:T(1,128)}', space=vmem, size = 0x9000, scoped, tag = 'internal scratch']
  %s0 = inlined_call_operand.vmem [shape: f32[5,2], index: 0, kind: input, shape index: {}]
  %s1 = inlined_call_operand.vmem [shape: f32[2], index: 1, kind: input, shape index: {}]
  %s2 = inlined_call_operand.vmem [shape: f32[2,5], index: 2, kind: input, shape index: {}]
  %s3 = inlined_call_operand.vmem [shape: f32[5], index: 3, kind: input, shape index: {}]
  %s4 = inlined_call_operand.vmem [shape: f32[5,8,128], index: 4, kind: input, shape index: {}]
  %s5 = inlined_call_operand.vmem [shape: f32[5,8,128], index: 5, kind: output, shape index: {}]
  %s6 = sld [smem:[#allocation0]]
  $region46: #{toy_model_forward.1} parent=0
    _
  %s8 = ssub.s32 1, %s6
  %s9 = scalar_select 0, %s8, %s6
  $region1: #{toy_model_forward.1} parent=0
    #allocation2 [shape = 'u8[4096]{0}', space=smem, size = 0x1000, scoped, tag = 'input window, operand 0, single buffered']
    #allocation3 [shape = 's32[1]{0}', space=sflag, size = 0x4, scoped, tag = 'scoped memory for toy_model_forward.1']
    #allocation4 [shape = 'u8[512]{0}', space=smem, size = 0x200, scoped, tag = 'input window, operand 1, single buffered']
    #allocation5 [shape = 's32[1]{0}', space=sflag, size = 0x4, scoped, tag = 'scoped memory for toy_model_forward.1']
    #allocation6 [shape = 'u8[1024]{0}', space=smem, size = 0x400, scoped, tag = 'input window, operand 2, single buffered']
    #allocation7 [shape = 'u8[512]{0}', space=smem, size = 0x200, scoped, tag = 'input window, operand 3, single buffered']
    #allocation8 [shape = 's32[1]{0}', space=sflag, size = 0x4, scoped, tag = 'scoped memory for toy_model_forward.1']
    %10 = vsyncpa [#allocation3], 0
    %11 = vsyncpa [#allocation5], 0
    %12 = vsyncpa [#allocation8], 0
    // Predicated region
    $region2: #{toy_model_forward.1} parent=1 // pred_check
      _
    $region3: #{toy_model_forward.1} parent=1 // pred_check_branch
      %14 = sbr.rel (0) target = $region5
    $region4: #{toy_model_forward.1} parent=1 // pred_region
      %16 = vsyncadd [#allocation3], 0
      %s18 = sshll.u32 %s0, 4
      %s19 = int_to_ptr.vmem [resolvable:$true] %s18
      %21 = dma.vmem_to_smem %s19, 128, [#allocation2], [#allocation3]
    $region5: #{toy_model_forward.1} parent=1 // pred_fallthru
      _
    // Predicated region
    $region6: #{toy_model_forward.1} parent=1 // pred_check
      _
    $region7: #{toy_model_forward.1} parent=1 // pred_check_branch
      %23 = sbr.rel (0) target = $region9
    $region8: #{toy_model_forward.1} parent=1 // pred_region
      %25 = vsyncadd [#allocation5], 0
      %s27 = sshll.u32 %s1, 4
      %s28 = int_to_ptr.vmem [resolvable:$true] %s27
      %30 = dma.vmem_to_smem %s28, 16, [#allocation4], [#allocation5]
    $region9: #{toy_model_forward.1} parent=1 // pred_fallthru
      _
    // Predicated region
    $region10: #{toy_model_forward.1} parent=1 // pred_check
      _
    $region11: #{toy_model_forward.1} parent=1 // pred_check_branch
      %32 = sbr.rel (0) target = $region13
    $region12: #{toy_model_forward.1} parent=1 // pred_region
      %34 = vsyncadd [#allocation5], 0
      %s36 = sshll.u32 %s2, 4
      %s37 = int_to_ptr.vmem [resolvable:$true] %s36
      %39 = dma.vmem_to_smem %s37, 32, [#allocation6], [#allocation5]
    $region13: #{toy_model_forward.1} parent=1 // pred_fallthru
      _
    // Predicated region
    $region14: #{toy_model_forward.1} parent=1 // pred_check
      _
    $region15: #{toy_model_forward.1} parent=1 // pred_check_branch
      %41 = sbr.rel (0) target = $region17
    $region16: #{toy_model_forward.1} parent=1 // pred_region
      %43 = vsyncadd [#allocation8], 0
      %s45 = sshll.u32 %s3, 4
      %s46 = int_to_ptr.vmem [resolvable:$true] %s45
      %48 = dma.vmem_to_smem %s46, 16, [#allocation7], [#allocation8]
    $region17: #{toy_model_forward.1} parent=1 // pred_fallthru
      _
    // Predicated region
    $region18: #{toy_model_forward.1} parent=1 // pred_check
      _
    $region19: #{toy_model_forward.1} parent=1 // pred_check_branch
      %50 = sbr.rel (0) target = $region21
    $region20: #{toy_model_forward.1} parent=1 // pred_region
      _
    $region21: #{toy_model_forward.1} parent=1 // pred_fallthru
      _
    // Predicated region
    $region22: #{toy_model_forward.1} parent=1 // pred_check
      _
    $region23: #{toy_model_forward.1} parent=1 // pred_check_branch
      %52 = sbr.rel (0) target = $region25
    $region24: #{toy_model_forward.1} parent=1 // pred_region
      %54 = dma.done [#allocation3], 128
    $region25: #{toy_model_forward.1} parent=1 // pred_fallthru
      _
    // Predicated region
    $region26: #{toy_model_forward.1} parent=1 // pred_check
      _
    $region27: #{toy_model_forward.1} parent=1 // pred_check_branch
      %56 = sbr.rel (0) target = $region29
    $region28: #{toy_model_forward.1} parent=1 // pred_region
      %58 = dma.done [#allocation5], 16
    $region29: #{toy_model_forward.1} parent=1 // pred_fallthru
      _
    // Predicated region
    $region30: #{toy_model_forward.1} parent=1 // pred_check
      _
    $region31: #{toy_model_forward.1} parent=1 // pred_check_branch
      %60 = sbr.rel (0) target = $region33
    $region32: #{toy_model_forward.1} parent=1 // pred_region
      %62 = dma.done [#allocation5], 32
    $region33: #{toy_model_forward.1} parent=1 // pred_fallthru
      _
    // Predicated region
    $region34: #{toy_model_forward.1} parent=1 // pred_check
      _
    $region35: #{toy_model_forward.1} parent=1 // pred_check_branch
      %64 = sbr.rel (0) target = $region37
    $region36: #{toy_model_forward.1} parent=1 // pred_region
      %66 = dma.done [#allocation8], 16
    $region37: #{toy_model_forward.1} parent=1 // pred_fallthru
      _
    %67 = sfence
    %s68 = sld [smem:[#allocation2]]
    %s69 = sld [smem:[#allocation2 + $0x1]]
    %s70 = sld [smem:[#allocation2 + $0x80]]
    %s71 = sld [smem:[#allocation2 + $0x81]]
    %s72 = sld [smem:[#allocation2 + $0x100]]
    %s73 = sld [smem:[#allocation2 + $0x101]]
    %s74 = sld [smem:[#allocation2 + $0x180]]
    %s75 = sld [smem:[#allocation2 + $0x181]]
    %s76 = sld [smem:[#allocation2 + $0x200]]
    %s77 = sld [smem:[#allocation2 + $0x201]]
    %s78 = sld [smem:[#allocation4]]
    %s79 = sld [smem:[#allocation4 + $0x1]]
    %s80 = sld [smem:[#allocation6]]
    %s81 = sld [smem:[#allocation6 + $0x1]]
    %s82 = sld [smem:[#allocation6 + $0x2]]
    %s83 = sld [smem:[#allocation6 + $0x3]]
    %s84 = sld [smem:[#allocation6 + $0x4]]
    %s85 = sld [smem:[#allocation6 + $0x80]]
    %s86 = sld [smem:[#allocation6 + $0x81]]
    %s87 = sld [smem:[#allocation6 + $0x82]]
    %s88 = sld [smem:[#allocation6 + $0x83]]
    %s89 = sld [smem:[#allocation6 + $0x84]]
    %s90 = sld [smem:[#allocation7]]
    %s91 = sld [smem:[#allocation7 + $0x1]]
    %s92 = sld [smem:[#allocation7 + $0x2]]
    %s93 = sld [smem:[#allocation7 + $0x3]]
    %s94 = sld [smem:[#allocation7 + $0x4]]
    %v95 = vld [vmem:[%s4] sm:$0xff]
    %s96 = scalar_lea.vmem %s4, 8
    %v97 = vld [vmem:[%s96] sm:$0xff]
    %s98 = scalar_lea.vmem %s4, 16
    %v99 = vld [vmem:[%s98] sm:$0xff]
    %s100 = scalar_lea.vmem %s4, 24
    %v101 = vld [vmem:[%s100] sm:$0xff]
    %s102 = scalar_lea.vmem %s4, 32
    %v103 = vld [vmem:[%s102] sm:$0xff]
    %v104 = vstv %s68
    %v105 = vmul.f32 %v95, %v104
    %v106 = vstv %s70
    %v107 = vmul.f32 %v97, %v106
    %v108 = vadd.f32 %v105, %v107
    %v109 = vstv %s72
    %v110 = vmul.f32 %v99, %v109
    %v111 = vadd.f32 %v108, %v110
    %v112 = vstv %s74
    %v113 = vmul.f32 %v101, %v112
    %v114 = vadd.f32 %v111, %v113
    %v115 = vstv %s76
    %v116 = vmul.f32 %v103, %v115
    %v117 = vadd.f32 %v114, %v116
    %v118 = vstv %s78
    %v119 = vadd.f32 %v117, %v118
    %v120 = vmax.f32 %v119, 0.0
    %v121 = vstv %s69
    %v122 = vmul.f32 %v95, %v121
    %v123 = vstv %s71
    %v124 = vmul.f32 %v97, %v123
    %v125 = vadd.f32 %v122, %v124
    %v126 = vstv %s73
    %v127 = vmul.f32 %v99, %v126
    %v128 = vadd.f32 %v125, %v127
    %v129 = vstv %s75
    %v130 = vmul.f32 %v101, %v129
    %v131 = vadd.f32 %v128, %v130
    %v132 = vstv %s77
    %v133 = vmul.f32 %v103, %v132
    %v134 = vadd.f32 %v131, %v133
    %v135 = vstv %s79
    %v136 = vadd.f32 %v134, %v135
    %v137 = vmax.f32 %v136, 0.0
    %v138 = vstv %s80
    %v139 = vmul.f32 %v120, %v138
    %v140 = vstv %s85
    %v141 = vmul.f32 %v137, %v140
    %v142 = vadd.f32 %v139, %v141
    %v143 = vstv %s90
    %v144 = vadd.f32 %v142, %v143
    %145 = vst [vmem:[%s5] sm:$0xff] %v144
    %v146 = vstv %s81
    %v147 = vmul.f32 %v120, %v146
    %v148 = vstv %s86
    %v149 = vmul.f32 %v137, %v148
    %v150 = vadd.f32 %v147, %v149
    %v151 = vstv %s91
    %v152 = vadd.f32 %v150, %v151
    %s153 = scalar_lea.vmem %s5, 8
    %154 = vst [vmem:[%s153] sm:$0xff] %v152
    %v155 = vstv %s82
    %v156 = vmul.f32 %v120, %v155
    %v157 = vstv %s87
    %v158 = vmul.f32 %v137, %v157
    %v159 = vadd.f32 %v156, %v158
    %v160 = vstv %s92
    %v161 = vadd.f32 %v159, %v160
    %s162 = scalar_lea.vmem %s5, 16
    %163 = vst [vmem:[%s162] sm:$0xff] %v161
    %v164 = vstv %s83
    %v165 = vmul.f32 %v120, %v164
    %v166 = vstv %s88
    %v167 = vmul.f32 %v137, %v166
    %v168 = vadd.f32 %v165, %v167
    %v169 = vstv %s93
    %v170 = vadd.f32 %v168, %v169
    %s171 = scalar_lea.vmem %s5, 24
    %172 = vst [vmem:[%s171] sm:$0xff] %v170
    %v173 = vstv %s84
    %v174 = vmul.f32 %v120, %v173
    %v175 = vstv %s89
    %v176 = vmul.f32 %v137, %v175
    %v177 = vadd.f32 %v174, %v176
    %v178 = vstv %s94
    %v179 = vadd.f32 %v177, %v178
    %s180 = scalar_lea.vmem %s5, 32
    %181 = vst [vmem:[%s180] sm:$0xff] %v179
    // Predicated region
    $region38: #{toy_model_forward.1} parent=1 // pred_check
      _
    $region39: #{toy_model_forward.1} parent=1 // pred_check_branch
      %183 = sbr.rel (0) target = $region41
    $region40: #{toy_model_forward.1} parent=1 // pred_region
      _
    $region41: #{toy_model_forward.1} parent=1 // pred_fallthru
      _
    // Predicated region
    $region42: #{toy_model_forward.1} parent=1 // pred_check
      _
    $region43: #{toy_model_forward.1} parent=1 // pred_check_branch
      %185 = sbr.rel (0) target = $region45
    $region44: #{toy_model_forward.1} parent=1 // pred_region
      _
    $region45: #{toy_model_forward.1} parent=1 // pred_fallthru
      _
    %186 = vsyncpa [#allocation3], 1
    %187 = vsyncpa [#allocation5], 1
    %188 = vsyncpa [#allocation8], 1

</llo_original>
